<compile_context>
chip_gen: v5e
topology: v5e:2x2
jax: 0.10.0
libtpu: 0.0.40
codegen_flags: <defaults>
</compile_context>

<pallas_src>
import functools

import jax
import jax.numpy as jnp
from jax import lax
from jax.experimental import pallas as pl
from jax.experimental.pallas import tpu as pltpu  # noqa: F401  (TPU backend)


# ------------------------------------------------------------------ fused kernel

def _gcn_caps_fused_kernel(
    x_ref, win_ref, bin_ref, mmask_ref, wcap_ref, bcap_ref, amask_ref,
    wg_ref, w1_ref, b1_ref, w2_ref, b2_ref,
    o_ref,
    *, T, B, n, d_c,
):
    bf16 = jnp.bfloat16
    f32 = jnp.float32

    # ---- Stage 1: packed crossmodal projection (one block-diag matmul) + T-sum
    # TODO(synk): MULTModel (crossmodal transformer) not provided; stand-in is a
    # per-modality dense projection + tanh, packed block-diagonally host-side.
    z = jnp.tanh(
        jnp.dot(x_ref[...].astype(bf16), win_ref[...],
                preferred_element_type=f32) + bin_ref[...])            # [T*B, 3D]
    zs = jnp.sum(z.reshape(T, B, z.shape[-1]), axis=0)                  # [B, 3D]

    # ---- Stage 2: capsule map + squash (CapsuleSequenceToGraph stand-in) ------
    # TODO(synk): dynamic-routing StoG not provided; stand-in = linear capsule map
    # of the time-summed features followed by the squash nonlinearity.
    # Rows of zs6 are (batch, modality); the modality mask zeroes the other blocks
    # so each capsule slab matmul sees only its own modality's features.
    zs6 = (zs[:, None, :] * mmask_ref[...][None, :, :]).reshape(3 * B, zs.shape[-1])
    zs6 = zs6.astype(bf16)                                              # [3B, 3D]
    parts = [jnp.dot(zs6, wcap_ref[g], preferred_element_type=f32)      # [3B, d_c]
             for g in range(n)]
    s = jnp.concatenate(parts, axis=0) + bcap_ref[...]                  # [n*3B, d_c]
    sq = jnp.sum(s * s, axis=-1, keepdims=True)
    v = (sq / (1.0 + sq)) * s * lax.rsqrt(sq + 1e-8)                    # squash

    # ---- Stage 3: all 6 (batch x modality) graphs at once (GraphCAGE stand-in)
    # TODO(synk): GraphCAGE not provided; stand-in = softmax adjacency of scaled
    # vertex dot-products, one graph-conv layer, max/mean readout.  The 6 graphs
    # share one [R, R] Gram kept block-diagonal by an additive mask.
    v_bf = v.astype(bf16)
    vw = jnp.dot(v_bf, wg_ref[...], preferred_element_type=f32)         # [R, d_c]
    gram = jnp.einsum('id,jd->ij', v_bf, v_bf, preferred_element_type=f32)
    logits = gram * (1.0 / float(d_c) ** 0.5) + amask_ref[...]          # [R, R]
    mx = jnp.max(logits, axis=-1, keepdims=True)
    e = jnp.exp(logits - mx)
    adj = e * pl.reciprocal(jnp.sum(e, axis=-1, keepdims=True), approx=True)
    h = jnp.maximum(
        jnp.dot(adj.astype(bf16), vw.astype(bf16),
                preferred_element_type=f32), 0.0)                       # [R, d_c]

    # Readout: max / mean over the n vertices of each (batch, modality) graph.
    hg = h.reshape(n, 3 * B, d_c)                     # vertex axis leading
    hmax = jnp.max(hg, axis=0).reshape(B, 3, d_c)                       # [B, 3, d_c]
    hmean = (jnp.sum(hg, axis=0) * (1.0 / float(n))).reshape(B, 3, d_c)
    feats = jnp.concatenate(
        [hmax[:, 0, :], hmean[:, 0, :],
         hmax[:, 1, :], hmean[:, 1, :],
         hmax[:, 2, :], hmean[:, 2, :]], axis=1)                        # [B, 6*d_c]

    # ---- Stage 4: exact head: preds = (tanh(feats @ W1 + b1) @ W2 + b2) * 10 --
    h1 = jnp.tanh(
        jnp.dot(feats.astype(bf16), w1_ref[...],
                preferred_element_type=f32) + b1_ref[...])
    o_ref[...] = (
        jnp.dot(h1.astype(bf16), w2_ref[...],
                preferred_element_type=f32) + b2_ref[...]) * 10.0


# --------------------------------------------------------------------- wrapper

def gcn_caps_forward(params, text, audio, video):
    T_t, B, t_in = text.shape
    T_a, _, a_in = audio.shape
    T_v, _, v_in = video.shape
    # TODO(synk): the packed stage-1 stand-in assumes equal sequence lengths.
    assert T_t == T_a == T_v, "packed stand-in requires T_t == T_a == T_v"
    T = T_t
    n, _, d_c = params["Wcap"].shape
    label_dim = params["W2"].shape[1]

    # Flatten + feature-concat the three modality streams (free XLA relayout).
    x_cat = jnp.concatenate(
        [text.reshape(T * B, t_in),
         audio.reshape(T * B, a_in),
         video.reshape(T * B, v_in)], axis=1)                           # [T*B, F]

    # Capsule bias, scaled by T_m (time-sum of a constant bias) and tiled to the
    # kernel's (vertex g, batch b, modality m) row order.
    bc = params["bcap"] * jnp.asarray([T_t, T_a, T_v], jnp.float32)[:, None, None]
    bc = jnp.broadcast_to(
        jnp.transpose(bc, (1, 0, 2))[:, None, :, :], (n, B, 3, d_c)
    ).reshape(n * B * 3, d_c)                                           # [n*3B, d_c]

    # Additive mask keeping the [R, R] Gram block-diagonal over the 3*B graphs.
    R = 3 * B * n
    q = jnp.arange(R, dtype=jnp.int32) % (3 * B)
    adj_mask = jnp.where(q[:, None] == q[None, :], 0.0, -1e30).astype(jnp.float32)

    kernel = functools.partial(_gcn_caps_fused_kernel, T=T, B=B, n=n, d_c=d_c)
    return pl.pallas_call(
        kernel,
        out_shape=jax.ShapeDtypeStruct((B, label_dim), jnp.float32),
        # No grid: the whole (tiny) working set lives in VMEM for one kernel step.
    )(
        x_cat,
        params["W_in"], params["b_in"], params["mod_mask"],
        params["Wcap"], bc, adj_mask,
        params["Wg"],
        params["W1"], params["b1"], params["W2"], params["b2"],
    )


# ----------------------------------------------------------------------- params

def init_params(key, t_in, a_in, v_in, mult_d, n, d_c, label_dim):
    f32, bf16 = jnp.float32, jnp.bfloat16

    def dense(k, fan_in, fan_out):
        # xavier-normal style deterministic init
        std = (2.0 / (fan_in + fan_out)) ** 0.5
        kw, _ = jax.random.split(k)
        return (jax.random.normal(kw, (fan_in, fan_out), f32) * std,
                jnp.zeros((fan_out,), f32))

    ks = jax.random.split(key, 9)
    D = mult_d

    # Stage-1 stand-in projections packed block-diagonally -> one matmul.
    wt, bt = dense(ks[0], t_in, D)
    wa, ba = dense(ks[1], a_in, D)
    wv, bv = dense(ks[2], v_in, D)
    F_tot = t_in + a_in + v_in
    w_in = jnp.zeros((F_tot, 3 * D), f32)
    w_in = w_in.at[:t_in, :D].set(wt)
    w_in = w_in.at[t_in:t_in + a_in, D:2 * D].set(wa)
    w_in = w_in.at[t_in + a_in:, 2 * D:].set(wv)
    b_in = jnp.concatenate([bt, ba, bv]).reshape(1, 3 * D)

    # Stage-2 stand-in capsule maps repacked so capsule g owns one [3D, d_c] slab.
    wcap = jnp.zeros((n, 3 * D, d_c), f32)
    bcs = []
    for m in range(3):
        w, b = dense(ks[3 + m], D, n * d_c)
        wcap = wcap.at[:, m * D:(m + 1) * D, :].set(
            jnp.transpose(w.reshape(D, n, d_c), (1, 0, 2)))
        bcs.append(b.reshape(n, d_c))
    bcap = jnp.stack(bcs, axis=0)                       # [3, n, d_c]

    # Modality block mask used to build the (b, m)-row LHS inside the kernel.
    lane = jnp.arange(3 * D) // D
    mod_mask = (lane[None, :] == jnp.arange(3)[:, None]).astype(f32)   # [3, 3D]

    wg, _ = dense(ks[6], d_c, d_c)                      # stand-in graph-conv W
    w1, b1 = dense(ks[7], 3 * d_c * 2, 2 * d_c)         # fc1 (exact module shape)
    w2, b2 = dense(ks[8], 2 * d_c, label_dim)           # fc2 (exact module shape)

    return {
        "W_in": w_in.astype(bf16), "b_in": b_in, "mod_mask": mod_mask,
        "Wcap": wcap.astype(bf16), "bcap": bcap,
        "Wg": wg.astype(bf16),
        "W1": w1.astype(bf16), "b1": b1.reshape(1, 2 * d_c),
        "W2": w2.astype(bf16), "b2": b2.reshape(1, label_dim),
    }


# ------------------------------------------------------------------------- main

if __name__ == "__main__":
    # Small, forward-consistent shapes.
    B = 2
    T_t = T_a = T_v = 8
    t_in, a_in, v_in = 8, 6, 4
    MULT_d = 16
    vertex_num = 4
    dim_capsule = 16
    label_dim = 1

    root = jax.random.PRNGKey(0)
    k_param, k_t, k_a, k_v = jax.random.split(root, 4)

    params = init_params(k_param, t_in, a_in, v_in, MULT_d,
                         vertex_num, dim_capsule, label_dim)

    text = jax.random.normal(k_t, (T_t, B, t_in), jnp.float32)
    audio = jax.random.normal(k_a, (T_a, B, a_in), jnp.float32)
    video = jax.random.normal(k_v, (T_v, B, v_in), jnp.float32)

    fwd = jax.jit(gcn_caps_forward)
    preds = jax.block_until_ready(fwd(params, text, audio, video))

    assert preds.shape == (B, label_dim), preds.shape
    assert bool(jnp.all(jnp.isfinite(preds)))
    print("KERNEL_OK")
</pallas_src>

<mosaic_0001>
module attributes {stable_mosaic.version = 11 : i64} {
  func.func @_gcn_caps_fused_kernel(%arg0: memref<16x18xf32, #tpu.memory_space<vmem>>, %arg1: memref<18x48xbf16, #tpu.memory_space<vmem>>, %arg2: memref<1x48xf32, #tpu.memory_space<vmem>>, %arg3: memref<3x48xf32, #tpu.memory_space<vmem>>, %arg4: memref<4x48x16xbf16, #tpu.memory_space<vmem>>, %arg5: memref<24x16xf32, #tpu.memory_space<vmem>>, %arg6: memref<24x24xf32, #tpu.memory_space<vmem>>, %arg7: memref<16x16xbf16, #tpu.memory_space<vmem>>, %arg8: memref<96x32xbf16, #tpu.memory_space<vmem>>, %arg9: memref<1x32xf32, #tpu.memory_space<vmem>>, %arg10: memref<32x1xbf16, #tpu.memory_space<vmem>>, %arg11: memref<1x1xf32, #tpu.memory_space<vmem>>, %arg12: memref<2x1xf32, #tpu.memory_space<vmem>>) attributes {dimension_semantics = [], scalar_prefetch = 0 : i64, scratch_operands = 0 : i64, tpu.core_type = #tpu.core_type<tc>} {
    %c0 = arith.constant 0 : index
    %c0_0 = arith.constant 0 : index
    %0 = vector.load %arg0[%c0, %c0_0] : memref<16x18xf32, #tpu.memory_space<vmem>>, vector<16x18xf32>
    %1 = arith.truncf %0 : vector<16x18xf32> to vector<16x18xbf16>
    %c0_1 = arith.constant 0 : index
    %c0_2 = arith.constant 0 : index
    %2 = vector.load %arg1[%c0_1, %c0_2] : memref<18x48xbf16, #tpu.memory_space<vmem>>, vector<18x48xbf16>
    %cst = arith.constant dense<0.000000e+00> : vector<16x48xf32>
    %3 = tpu.matmul %1, %2, %cst {dimension_numbers = #tpu.dot_dimension_numbers<[1], [0], [0], [1], [0, 0, 1, 1], [], []>} : vector<16x18xbf16>, vector<18x48xbf16>, vector<16x48xf32> -> vector<16x48xf32>
    %c0_3 = arith.constant 0 : index
    %c0_4 = arith.constant 0 : index
    %4 = vector.load %arg2[%c0_3, %c0_4] : memref<1x48xf32, #tpu.memory_space<vmem>>, vector<1x48xf32>
    %5 = vector.broadcast %4 : vector<1x48xf32> to vector<16x48xf32>
    %6 = arith.addf %3, %5 : vector<16x48xf32>
    %7 = math.tanh %6 : vector<16x48xf32>
    %8 = vector.shape_cast %7 : vector<16x48xf32> to vector<8x2x48xf32>
    %cst_5 = arith.constant dense<0.000000e+00> : vector<2x48xf32>
    %9 = vector.multi_reduction <add>, %8, %cst_5 [0] : vector<8x2x48xf32> to vector<2x48xf32>
    %10 = vector.shape_cast %9 : vector<2x48xf32> to vector<2x1x48xf32>
    %c0_6 = arith.constant 0 : index
    %c0_7 = arith.constant 0 : index
    %11 = vector.load %arg3[%c0_6, %c0_7] : memref<3x48xf32, #tpu.memory_space<vmem>>, vector<3x48xf32>
    %12 = vector.shape_cast %11 : vector<3x48xf32> to vector<1x3x48xf32>
    %13 = vector.broadcast %10 : vector<2x1x48xf32> to vector<2x3x48xf32>
    %14 = vector.broadcast %12 : vector<1x3x48xf32> to vector<2x3x48xf32>
    %15 = arith.mulf %13, %14 : vector<2x3x48xf32>
    %16 = vector.shape_cast %15 : vector<2x3x48xf32> to vector<6x48xf32>
    %17 = arith.truncf %16 : vector<6x48xf32> to vector<6x48xbf16>
    %c0_8 = arith.constant 0 : index
    %c0_9 = arith.constant 0 : index
    %c0_10 = arith.constant 0 : index
    %18 = vector.load %arg4[%c0_8, %c0_9, %c0_10] : memref<4x48x16xbf16, #tpu.memory_space<vmem>>, vector<1x48x16xbf16>
    %19 = vector.shape_cast %18 : vector<1x48x16xbf16> to vector<48x16xbf16>
    %cst_11 = arith.constant dense<0.000000e+00> : vector<6x16xf32>
    %20 = tpu.matmul %17, %19, %cst_11 {dimension_numbers = #tpu.dot_dimension_numbers<[1], [0], [0], [1], [0, 0, 1, 1], [], []>} : vector<6x48xbf16>, vector<48x16xbf16>, vector<6x16xf32> -> vector<6x16xf32>
    %c1 = arith.constant 1 : index
    %c0_12 = arith.constant 0 : index
    %c0_13 = arith.constant 0 : index
    %21 = vector.load %arg4[%c1, %c0_12, %c0_13] : memref<4x48x16xbf16, #tpu.memory_space<vmem>>, vector<1x48x16xbf16>
    %22 = vector.shape_cast %21 : vector<1x48x16xbf16> to vector<48x16xbf16>
    %cst_14 = arith.constant dense<0.000000e+00> : vector<6x16xf32>
    %23 = tpu.matmul %17, %22, %cst_14 {dimension_numbers = #tpu.dot_dimension_numbers<[1], [0], [0], [1], [0, 0, 1, 1], [], []>} : vector<6x48xbf16>, vector<48x16xbf16>, vector<6x16xf32> -> vector<6x16xf32>
    %c2 = arith.constant 2 : index
    %c0_15 = arith.constant 0 : index
    %c0_16 = arith.constant 0 : index
    %24 = vector.load %arg4[%c2, %c0_15, %c0_16] : memref<4x48x16xbf16, #tpu.memory_space<vmem>>, vector<1x48x16xbf16>
    %25 = vector.shape_cast %24 : vector<1x48x16xbf16> to vector<48x16xbf16>
    %cst_17 = arith.constant dense<0.000000e+00> : vector<6x16xf32>
    %26 = tpu.matmul %17, %25, %cst_17 {dimension_numbers = #tpu.dot_dimension_numbers<[1], [0], [0], [1], [0, 0, 1, 1], [], []>} : vector<6x48xbf16>, vector<48x16xbf16>, vector<6x16xf32> -> vector<6x16xf32>
    %c3 = arith.constant 3 : index
    %c0_18 = arith.constant 0 : index
    %c0_19 = arith.constant 0 : index
    %27 = vector.load %arg4[%c3, %c0_18, %c0_19] : memref<4x48x16xbf16, #tpu.memory_space<vmem>>, vector<1x48x16xbf16>
    %28 = vector.shape_cast %27 : vector<1x48x16xbf16> to vector<48x16xbf16>
    %cst_20 = arith.constant dense<0.000000e+00> : vector<6x16xf32>
    %29 = tpu.matmul %17, %28, %cst_20 {dimension_numbers = #tpu.dot_dimension_numbers<[1], [0], [0], [1], [0, 0, 1, 1], [], []>} : vector<6x48xbf16>, vector<48x16xbf16>, vector<6x16xf32> -> vector<6x16xf32>
    %30 = tpu.concatenate %20, %23, %26, %29 in 0 : vector<6x16xf32>, vector<6x16xf32>, vector<6x16xf32>, vector<6x16xf32> -> vector<24x16xf32>
    %c0_21 = arith.constant 0 : index
    %c0_22 = arith.constant 0 : index
    %31 = vector.load %arg5[%c0_21, %c0_22] : memref<24x16xf32, #tpu.memory_space<vmem>>, vector<24x16xf32>
    %32 = arith.addf %30, %31 : vector<24x16xf32>
    %33 = arith.mulf %32, %32 : vector<24x16xf32>
    %cst_23 = arith.constant dense<0.000000e+00> : vector<24xf32>
    %34 = vector.multi_reduction <add>, %33, %cst_23 [1] : vector<24x16xf32> to vector<24xf32>
    %35 = vector.shape_cast %34 : vector<24xf32> to vector<24x1xf32>
    %cst_24 = arith.constant 1.000000e+00 : f32
    %36 = vector.broadcast %cst_24 : f32 to vector<24x1xf32>
    %37 = arith.addf %36, %35 : vector<24x1xf32>
    %38 = arith.divf %35, %37 : vector<24x1xf32>
    %39 = vector.broadcast %38 : vector<24x1xf32> to vector<24x16xf32>
    %40 = arith.mulf %39, %32 : vector<24x16xf32>
    %cst_25 = arith.constant 9.99999993E-9 : f32
    %41 = vector.broadcast %cst_25 : f32 to vector<24x1xf32>
    %42 = arith.addf %35, %41 : vector<24x1xf32>
    %43 = math.rsqrt %42 : vector<24x1xf32>
    %44 = vector.broadcast %43 : vector<24x1xf32> to vector<24x16xf32>
    %45 = arith.mulf %40, %44 : vector<24x16xf32>
    %46 = arith.truncf %45 : vector<24x16xf32> to vector<24x16xbf16>
    %c0_26 = arith.constant 0 : index
    %c0_27 = arith.constant 0 : index
    %47 = vector.load %arg7[%c0_26, %c0_27] : memref<16x16xbf16, #tpu.memory_space<vmem>>, vector<16x16xbf16>
    %cst_28 = arith.constant dense<0.000000e+00> : vector<24x16xf32>
    %48 = tpu.matmul %46, %47, %cst_28 {dimension_numbers = #tpu.dot_dimension_numbers<[1], [0], [0], [1], [0, 0, 1, 1], [], []>} : vector<24x16xbf16>, vector<16x16xbf16>, vector<24x16xf32> -> vector<24x16xf32>
    "tpu.trace_start"() <{level = 10 : i32, message = "id,jd->ij"}> : () -> ()
    %cst_29 = arith.constant dense<0.000000e+00> : vector<24x24xf32>
    %49 = tpu.matmul %46, %46, %cst_29 {dimension_numbers = #tpu.dot_dimension_numbers<[1], [1], [0], [0], [0, 0, 1, 0], [], []>} : vector<24x16xbf16>, vector<24x16xbf16>, vector<24x24xf32> -> vector<24x24xf32>
    "tpu.trace_stop"() : () -> ()
    %cst_30 = arith.constant 2.500000e-01 : f32
    %50 = vector.broadcast %cst_30 : f32 to vector<24x24xf32>
    %51 = arith.mulf %49, %50 : vector<24x24xf32>
    %c0_31 = arith.constant 0 : index
    %c0_32 = arith.constant 0 : index
    %52 = vector.load %arg6[%c0_31, %c0_32] : memref<24x24xf32, #tpu.memory_space<vmem>>, vector<24x24xf32>
    %53 = arith.addf %51, %52 : vector<24x24xf32>
    %cst_33 = arith.constant dense<0xFF800000> : vector<24xf32>
    %54 = vector.multi_reduction <maximumf>, %53, %cst_33 [1] : vector<24x24xf32> to vector<24xf32>
    %55 = vector.shape_cast %54 : vector<24xf32> to vector<24x1xf32>
    %56 = vector.broadcast %55 : vector<24x1xf32> to vector<24x24xf32>
    %57 = arith.subf %53, %56 : vector<24x24xf32>
    %58 = math.exp %57 : vector<24x24xf32>
    %cst_34 = arith.constant dense<0.000000e+00> : vector<24xf32>
    %59 = vector.multi_reduction <add>, %58, %cst_34 [1] : vector<24x24xf32> to vector<24xf32>
    %60 = vector.shape_cast %59 : vector<24xf32> to vector<24x1xf32>
    %61 = tpu.reciprocal %60 {approx = true} : vector<24x1xf32> -> vector<24x1xf32>
    %62 = vector.broadcast %61 : vector<24x1xf32> to vector<24x24xf32>
    %63 = arith.mulf %58, %62 : vector<24x24xf32>
    %64 = arith.truncf %63 : vector<24x24xf32> to vector<24x24xbf16>
    %65 = arith.truncf %48 : vector<24x16xf32> to vector<24x16xbf16>
    %cst_35 = arith.constant dense<0.000000e+00> : vector<24x16xf32>
    %66 = tpu.matmul %64, %65, %cst_35 {dimension_numbers = #tpu.dot_dimension_numbers<[1], [0], [0], [1], [0, 0, 1, 1], [], []>} : vector<24x24xbf16>, vector<24x16xbf16>, vector<24x16xf32> -> vector<24x16xf32>
    %cst_36 = arith.constant 0.000000e+00 : f32
    %67 = vector.broadcast %cst_36 : f32 to vector<24x16xf32>
    %68 = arith.maximumf %66, %67 : vector<24x16xf32>
    %69 = vector.shape_cast %68 : vector<24x16xf32> to vector<4x6x16xf32>
    %cst_37 = arith.constant dense<0xFF800000> : vector<6x16xf32>
    %70 = vector.multi_reduction <maximumf>, %69, %cst_37 [0] : vector<4x6x16xf32> to vector<6x16xf32>
    %71 = vector.shape_cast %70 : vector<6x16xf32> to vector<2x3x16xf32>
    %cst_38 = arith.constant dense<0.000000e+00> : vector<6x16xf32>
    %72 = vector.multi_reduction <add>, %69, %cst_38 [0] : vector<4x6x16xf32> to vector<6x16xf32>
    %cst_39 = arith.constant 2.500000e-01 : f32
    %73 = vector.broadcast %cst_39 : f32 to vector<6x16xf32>
    %74 = arith.mulf %72, %73 : vector<6x16xf32>
    %75 = vector.shape_cast %74 : vector<6x16xf32> to vector<2x3x16xf32>
    %76 = vector.extract_strided_slice %71 {offsets = [0, 0, 0], sizes = [2, 1, 16], strides = [1, 1, 1]} : vector<2x3x16xf32> to vector<2x1x16xf32>
    %77 = vector.shape_cast %76 : vector<2x1x16xf32> to vector<2x16xf32>
    %78 = vector.extract_strided_slice %75 {offsets = [0, 0, 0], sizes = [2, 1, 16], strides = [1, 1, 1]} : vector<2x3x16xf32> to vector<2x1x16xf32>
    %79 = vector.shape_cast %78 : vector<2x1x16xf32> to vector<2x16xf32>
    %80 = vector.extract_strided_slice %71 {offsets = [0, 1, 0], sizes = [2, 1, 16], strides = [1, 1, 1]} : vector<2x3x16xf32> to vector<2x1x16xf32>
    %81 = vector.shape_cast %80 : vector<2x1x16xf32> to vector<2x16xf32>
    %82 = vector.extract_strided_slice %75 {offsets = [0, 1, 0], sizes = [2, 1, 16], strides = [1, 1, 1]} : vector<2x3x16xf32> to vector<2x1x16xf32>
    %83 = vector.shape_cast %82 : vector<2x1x16xf32> to vector<2x16xf32>
    %84 = vector.extract_strided_slice %71 {offsets = [0, 2, 0], sizes = [2, 1, 16], strides = [1, 1, 1]} : vector<2x3x16xf32> to vector<2x1x16xf32>
    %85 = vector.shape_cast %84 : vector<2x1x16xf32> to vector<2x16xf32>
    %86 = vector.extract_strided_slice %75 {offsets = [0, 2, 0], sizes = [2, 1, 16], strides = [1, 1, 1]} : vector<2x3x16xf32> to vector<2x1x16xf32>
    %87 = vector.shape_cast %86 : vector<2x1x16xf32> to vector<2x16xf32>
    %88 = tpu.concatenate %77, %79, %81, %83, %85, %87 in 1 : vector<2x16xf32>, vector<2x16xf32>, vector<2x16xf32>, vector<2x16xf32>, vector<2x16xf32>, vector<2x16xf32> -> vector<2x96xf32>
    %89 = arith.truncf %88 : vector<2x96xf32> to vector<2x96xbf16>
    %c0_40 = arith.constant 0 : index
    %c0_41 = arith.constant 0 : index
    %90 = vector.load %arg8[%c0_40, %c0_41] : memref<96x32xbf16, #tpu.memory_space<vmem>>, vector<96x32xbf16>
    %cst_42 = arith.constant dense<0.000000e+00> : vector<2x32xf32>
    %91 = tpu.matmul %89, %90, %cst_42 {dimension_numbers = #tpu.dot_dimension_numbers<[1], [0], [0], [1], [0, 0, 1, 1], [], []>} : vector<2x96xbf16>, vector<96x32xbf16>, vector<2x32xf32> -> vector<2x32xf32>
    %c0_43 = arith.constant 0 : index
    %c0_44 = arith.constant 0 : index
    %92 = vector.load %arg9[%c0_43, %c0_44] : memref<1x32xf32, #tpu.memory_space<vmem>>, vector<1x32xf32>
    %93 = vector.broadcast %92 : vector<1x32xf32> to vector<2x32xf32>
    %94 = arith.addf %91, %93 : vector<2x32xf32>
    %95 = math.tanh %94 : vector<2x32xf32>
    %96 = arith.truncf %95 : vector<2x32xf32> to vector<2x32xbf16>
    %c0_45 = arith.constant 0 : index
    %c0_46 = arith.constant 0 : index
    %97 = vector.load %arg10[%c0_45, %c0_46] : memref<32x1xbf16, #tpu.memory_space<vmem>>, vector<32x1xbf16>
    %cst_47 = arith.constant dense<0.000000e+00> : vector<2x1xf32>
    %98 = tpu.matmul %96, %97, %cst_47 {dimension_numbers = #tpu.dot_dimension_numbers<[1], [0], [0], [1], [0, 0, 1, 1], [], []>} : vector<2x32xbf16>, vector<32x1xbf16>, vector<2x1xf32> -> vector<2x1xf32>
    %c0_48 = arith.constant 0 : index
    %c0_49 = arith.constant 0 : index
    %99 = vector.load %arg11[%c0_48, %c0_49] : memref<1x1xf32, #tpu.memory_space<vmem>>, vector<1x1xf32>
    %100 = vector.broadcast %99 : vector<1x1xf32> to vector<2x1xf32>
    %101 = arith.addf %98, %100 : vector<2x1xf32>
    %cst_50 = arith.constant 1.000000e+01 : f32
    %102 = vector.broadcast %cst_50 : f32 to vector<2x1xf32>
    %103 = arith.mulf %101, %102 : vector<2x1xf32>
    %c0_51 = arith.constant 0 : index
    %c0_52 = arith.constant 0 : index
    %104 = vector.load %arg12[%c0_51, %c0_52] : memref<2x1xf32, #tpu.memory_space<vmem>>, vector<2x1xf32>
    tpu.vector_store %arg12[%c0_51, %c0_52], %103 {strides = array<i32>} : memref<2x1xf32, #tpu.memory_space<vmem>>, vector<2x1xf32>,
    return
  }
}

</mosaic_0001>

<llo_original>
// kernel: gcn_caps_forward.1
$region0: #{gcn_caps_forward.1}
  #allocation0 [shape = 'u32[]', space=smem, size = 0x4, offset = 0x4, fixed_abs, tag = 'smem constant byte address 0x4 - core index']
  #allocation1 [shape = 'u32[72,128]{1,0:T(1,128)}', space=vmem, size = 0x9000, scoped, tag = 'internal scratch']
  #allocation2 [shape = 'f32[1,1]{1,0:T(1,128)S(1)}', space=vmem, size = 0x200, scoped, tag = 'scoped memory for gcn_caps_forward.1']
  %s0 = inlined_call_operand.vmem [shape: f32[16,18], index: 0, kind: input, shape index: {}]
  %s1 = inlined_call_operand.vmem [shape: bf16[18,48], index: 1, kind: input, shape index: {}]
  %s2 = inlined_call_operand.vmem [shape: f32[1,48], index: 2, kind: input, shape index: {}]
  %s3 = inlined_call_operand.vmem [shape: f32[3,48], index: 3, kind: input, shape index: {}]
  %s4 = inlined_call_operand.vmem [shape: bf16[4,48,16], index: 4, kind: input, shape index: {}]
  %s5 = inlined_call_operand.vmem [shape: f32[24,16], index: 5, kind: input, shape index: {}]
  %s6 = inlined_call_operand.vmem [shape: f32[24,24], index: 6, kind: input, shape index: {}]
  %s7 = inlined_call_operand.vmem [shape: bf16[16,16], index: 7, kind: input, shape index: {}]
  %s8 = inlined_call_operand.vmem [shape: bf16[96,32], index: 8, kind: input, shape index: {}]
  %s9 = inlined_call_operand.vmem [shape: f32[1,32], index: 9, kind: input, shape index: {}]
  %s10 = inlined_call_operand.vmem [shape: bf16[32,1], index: 10, kind: input, shape index: {}]
  %s11 = inlined_call_operand.<no memory space> [shape: f32[1,1], index: 11, kind: input, shape index: {}]
  %s12 = inlined_call_operand.vmem [shape: f32[2,1], index: 12, kind: output, shape index: {}]
  %s13 = sld [smem:[#allocation0]]
  $region58: #{gcn_caps_forward.1} parent=0
    _
  %s15 = ssub.s32 1, %s13
  %s16 = scalar_select 0, %s15, %s13
  %v17 = vstv %s11
  %18 = vst [vmem:[#allocation2] sm:$0x1] %v17
  // Predicated region
  $region2: #{gcn_caps_forward.1} parent=0 // pred_check
    _
  $region3: #{gcn_caps_forward.1} parent=0 // pred_check_branch
    %20 = sbr.rel (0) target = $region5
  $region4: #{gcn_caps_forward.1} parent=0 // pred_region
    _
  $region5: #{gcn_caps_forward.1} parent=0 // pred_fallthru
    _
  // Predicated region
  $region6: #{gcn_caps_forward.1} parent=0 // pred_check
    _
  $region7: #{gcn_caps_forward.1} parent=0 // pred_check_branch
    %22 = sbr.rel (0) target = $region9
  $region8: #{gcn_caps_forward.1} parent=0 // pred_region
    _
  $region9: #{gcn_caps_forward.1} parent=0 // pred_fallthru
    _
  // Predicated region
  $region10: #{gcn_caps_forward.1} parent=0 // pred_check
    _
  $region11: #{gcn_caps_forward.1} parent=0 // pred_check_branch
    %24 = sbr.rel (0) target = $region13
  $region12: #{gcn_caps_forward.1} parent=0 // pred_region
    _
  $region13: #{gcn_caps_forward.1} parent=0 // pred_fallthru
    _
  // Predicated region
  $region14: #{gcn_caps_forward.1} parent=0 // pred_check
    _
  $region15: #{gcn_caps_forward.1} parent=0 // pred_check_branch
    %26 = sbr.rel (0) target = $region17
  $region16: #{gcn_caps_forward.1} parent=0 // pred_region
    _
  $region17: #{gcn_caps_forward.1} parent=0 // pred_fallthru
    _
  // Predicated region
  $region18: #{gcn_caps_forward.1} parent=0 // pred_check
    _
  $region19: #{gcn_caps_forward.1} parent=0 // pred_check_branch
    %28 = sbr.rel (0) target = $region21
  $region20: #{gcn_caps_forward.1} parent=0 // pred_region
    _
  $region21: #{gcn_caps_forward.1} parent=0 // pred_fallthru
    _
  // Predicated region
  $region22: #{gcn_caps_forward.1} parent=0 // pred_check
    _
  $region23: #{gcn_caps_forward.1} parent=0 // pred_check_branch
    %30 = sbr.rel (0) target = $region25
  $region24: #{gcn_caps_forward.1} parent=0 // pred_region
    _
  $region25: #{gcn_caps_forward.1} parent=0 // pred_fallthru
    _
  // Predicated region
  $region26: #{gcn_caps_forward.1} parent=0 // pred_check
    _
  $region27: #{gcn_caps_forward.1} parent=0 // pred_check_branch
    %32 = sbr.rel (0) target = $region29
  $region28: #{gcn_caps_forward.1} parent=0 // pred_region
    _
  $region29: #{gcn_caps_forward.1} parent=0 // pred_fallthru
    _
  // Predicated region
  $region30: #{gcn_caps_forward.1} parent=0 // pred_check
    _
  $region31: #{gcn_caps_forward.1} parent=0 // pred_check_branch
    %34 = sbr.rel (0) target = $region33
  $region32: #{gcn_caps_forward.1} parent=0 // pred_region
    _
  $region33: #{gcn_caps_forward.1} parent=0 // pred_fallthru
    _
  // Predicated region
  $region34: #{gcn_caps_forward.1} parent=0 // pred_check
    _
  $region35: #{gcn_caps_forward.1} parent=0 // pred_check_branch
    %36 = sbr.rel (0) target = $region37
  $region36: #{gcn_caps_forward.1} parent=0 // pred_region
    _
  $region37: #{gcn_caps_forward.1} parent=0 // pred_fallthru
    _
  // Predicated region
  $region38: #{gcn_caps_forward.1} parent=0 // pred_check
    _
  $region39: #{gcn_caps_forward.1} parent=0 // pred_check_branch
    %38 = sbr.rel (0) target = $region41
  $region40: #{gcn_caps_forward.1} parent=0 // pred_region
    _
  $region41: #{gcn_caps_forward.1} parent=0 // pred_fallthru
    _
  // Predicated region
  $region42: #{gcn_caps_forward.1} parent=0 // pred_check
    _
  $region43: #{gcn_caps_forward.1} parent=0 // pred_check_branch
    %40 = sbr.rel (0) target = $region45
  $region44: #{gcn_caps_forward.1} parent=0 // pred_region
    _
  $region45: #{gcn_caps_forward.1} parent=0 // pred_fallthru
    _
  // Predicated region
  $region46: #{gcn_caps_forward.1} parent=0 // pred_check
    _
  $region47: #{gcn_caps_forward.1} parent=0 // pred_check_branch
    %42 = sbr.rel (0) target = $region49
  $region48: #{gcn_caps_forward.1} parent=0 // pred_region
    _
  $region49: #{gcn_caps_forward.1} parent=0 // pred_fallthru
    _
  %v44 = vld [vmem:[%s0] sm:$0xff]
  %v45 = vld [vmem:[%s0 + $0x8] sm:$0xff]
  %v46 = vpack.c.bf16 %v45, %v44
  %v47 = vld [vmem:[%s1] sm:$0xf]
  %v48 = vld [vmem:[%s1 + $0x4] sm:$0xf]
  %v49 = vld [vmem:[%s1 + $0x8] sm:$0x1]
  %v50 = vld [vmem:[%s2] sm:$0x1]
  %v52 = vperm.slane %v50, 0
  %v57 = vunpack.c.l.b16 %v47
  %v58 = vunpack.c.l.b16 %v48
  %v59 = vunpack.c.l.b16 %v49
  %v60 = vpack.c.b16 %v58, %v57
  %v61 = vpack.c.b16 %v59, %v59
  %vm63 = vcmask 146432
  %v65 = vsel %vm63, %v46, 0
  %vm67 = vcmask 1040384
  %v69 = vsel %vm67, %v61, 0
  %71 = vmatpush.bf16.msra.mxu0 0
  %72 = vmatpush.bf16.msra.mxu0 0
  %73 = vmatpush.bf16.msra.mxu0 0
  %74 = vmatpush.bf16.msra.mxu0 0
  %75 = vmatpush.bf16.msra.mxu0 0
  %76 = vmatpush.bf16.msra.mxu0 0
  %77 = vmatpush.bf16.msra.mxu0 %v69
  %78 = vmatpush.bf16.msra.mxu0 %v60
  %79 = vmatmul.bf16.gmra.mxu0 %v65
  %v80 = vpop.f32.mrf.mxu0
  %v81 = vadd.f32 %v52, %v80
  %v82 = vpop.f32.mrf.mxu0
  %v83 = vadd.f32 %v52, %v82
  %84 = vdwg.mxu0
  %v85 = vtanh.pop %v81
  %v86 = vtanh.pop %v83
  %v89 = vrot.slane %v85, 2
  %v90 = vrot.slane %v85, 4
  %v91 = vrot.slane %v85, 6
  %v92 = vrot.slane %v86, 2
  %v93 = vrot.slane %v86, 4
  %v94 = vrot.slane %v86, 6
  %vm101 = vcmask 386048
  %v102 = vsel %vm101, %v85, 0.0
  %v103 = vsel %vm101, %v89, 0.0
  %v104 = vadd.f32 %v102, %v103
  %v105 = vsel %vm101, %v90, 0.0
  %v106 = vadd.f32 %v104, %v105
  %v107 = vsel %vm101, %v91, 0.0
  %v108 = vadd.f32 %v106, %v107
  %v109 = vsel %vm101, %v86, 0.0
  %v110 = vadd.f32 %v108, %v109
  %v111 = vsel %vm101, %v92, 0.0
  %v112 = vadd.f32 %v110, %v111
  %v113 = vsel %vm101, %v93, 0.0
  %v114 = vadd.f32 %v112, %v113
  %v115 = vsel %vm101, %v94, 0.0
  %v116 = vadd.f32 %v114, %v115
  %v118 = vrot.slane %v116, 1
  %v119 = vld [vmem:[%s3] sm:$0x7]
  %v120 = vperm.slane %v116, 0
  %v121 = vperm.slane %v118, 0
  %v124 = vmul.f32 %v120, %v119
  %v125 = vmul.f32 %v121, %v119
  %v128 = vrot.slane %v124, 1
  %v129 = vrot.slane %v124, 2
  %v130 = vrot.slane %v125, 1
  %v131 = vrot.slane %v125, 2
  %132 = vst [vmem:[#allocation1] ss:$9 sm:$0xff] %v124
  %s133 = scalar_lea.vmem [#allocation1], 1
  %134 = vst [vmem:[%s133] ss:$9 sm:$0xff] %v128
  %s135 = scalar_lea.vmem [#allocation1], 2
  %136 = vst [vmem:[%s135] ss:$9 sm:$0xff] %v129
  %s137 = scalar_lea.vmem [#allocation1], 3
  %138 = vst [vmem:[%s137] ss:$9 sm:$0xff] %v125
  %s139 = scalar_lea.vmem [#allocation1], 4
  %140 = vst [vmem:[%s139] ss:$9 sm:$0xff] %v130
  %s141 = scalar_lea.vmem [#allocation1], 5
  %142 = vst [vmem:[%s141] ss:$9 sm:$0xff] %v131
  %v143 = vld [vmem:[#allocation1] sm:$0xff]
  %v145 = vpack.c.bf16 %v143, %v143
  %v146 = vld [vmem:[%s4] sm:$0xf]
  %v147 = vld [vmem:[%s4 + $0x4] sm:$0xf]
  %v148 = vld [vmem:[%s4 + $0x8] sm:$0xf]
  %v149 = vld [vmem:[%s4 + $0xc] sm:$0xf]
  %v150 = vld [vmem:[%s4 + $0x10] sm:$0xf]
  %v151 = vld [vmem:[%s4 + $0x14] sm:$0xf]
  %v158 = vunpack.c.l.b16 %v146
  %v159 = vunpack.c.l.b16 %v147
  %v160 = vunpack.c.l.b16 %v148
  %v161 = vunpack.c.l.b16 %v149
  %v162 = vunpack.c.l.b16 %v150
  %v163 = vunpack.c.l.b16 %v151
  %v164 = vpack.c.b16 %v159, %v158
  %v165 = vpack.c.b16 %v161, %v160
  %v166 = vpack.c.b16 %v163, %v162
  %vm170 = vcmask 392192
  %v172 = vsel %vm170, %v145, 0
  %174 = vmatpush.bf16.msra.mxu0 0
  %175 = vmatpush.bf16.msra.mxu0 0
  %176 = vmatpush.bf16.msra.mxu0 0
  %177 = vmatpush.bf16.msra.mxu0 0
  %178 = vmatpush.bf16.msra.mxu0 0
  %179 = vmatpush.bf16.msra.mxu0 %v166
  %180 = vmatpush.bf16.msra.mxu0 %v165
  %181 = vmatpush.bf16.msra.mxu0 %v164
  %182 = vmatmul.bf16.gmra.mxu0 %v172
  %v183 = vpop.f32.mrf.mxu0
  %v184 = vadd.f32 0.0, %v183
  %v185 = vpop.f32.mrf.mxu0
  %186 = vdwg.mxu0
  %s187 = scalar_lea.vmem %s4, 24
  %v188 = vld [vmem:[%s187] sm:$0xf]
  %v189 = vld [vmem:[%s187 + $0x4] sm:$0xf]
  %v190 = vld [vmem:[%s187 + $0x8] sm:$0xf]
  %v191 = vld [vmem:[%s187 + $0xc] sm:$0xf]
  %v192 = vld [vmem:[%s187 + $0x10] sm:$0xf]
  %v193 = vld [vmem:[%s187 + $0x14] sm:$0xf]
  %v200 = vunpack.c.l.b16 %v188
  %v201 = vunpack.c.l.b16 %v189
  %v202 = vunpack.c.l.b16 %v190
  %v203 = vunpack.c.l.b16 %v191
  %v204 = vunpack.c.l.b16 %v192
  %v205 = vunpack.c.l.b16 %v193
  %v206 = vpack.c.b16 %v201, %v200
  %v207 = vpack.c.b16 %v203, %v202
  %v208 = vpack.c.b16 %v205, %v204
  %212 = vmatpush.bf16.msra.mxu0 0
  %213 = vmatpush.bf16.msra.mxu0 0
  %214 = vmatpush.bf16.msra.mxu0 0
  %215 = vmatpush.bf16.msra.mxu0 0
  %216 = vmatpush.bf16.msra.mxu0 0
  %217 = vmatpush.bf16.msra.mxu0 %v208
  %218 = vmatpush.bf16.msra.mxu0 %v207
  %219 = vmatpush.bf16.msra.mxu0 %v206
  %220 = vmatmul.bf16.gmra.mxu0 %v172
  %v221 = vpop.f32.mrf.mxu0
  %v222 = vadd.f32 0.0, %v221
  %v223 = vpop.f32.mrf.mxu0
  %224 = vdwg.mxu0
  %s225 = scalar_lea.vmem %s4, 48
  %v226 = vld [vmem:[%s225] sm:$0xf]
  %v227 = vld [vmem:[%s225 + $0x4] sm:$0xf]
  %v228 = vld [vmem:[%s225 + $0x8] sm:$0xf]
  %v229 = vld [vmem:[%s225 + $0xc] sm:$0xf]
  %v230 = vld [vmem:[%s225 + $0x10] sm:$0xf]
  %v231 = vld [vmem:[%s225 + $0x14] sm:$0xf]
  %v238 = vunpack.c.l.b16 %v226
  %v239 = vunpack.c.l.b16 %v227
  %v240 = vunpack.c.l.b16 %v228
  %v241 = vunpack.c.l.b16 %v229
  %v242 = vunpack.c.l.b16 %v230
  %v243 = vunpack.c.l.b16 %v231
  %v244 = vpack.c.b16 %v239, %v238
  %v245 = vpack.c.b16 %v241, %v240
  %v246 = vpack.c.b16 %v243, %v242
  %250 = vmatpush.bf16.msra.mxu0 0
  %251 = vmatpush.bf16.msra.mxu0 0
  %252 = vmatpush.bf16.msra.mxu0 0
  %253 = vmatpush.bf16.msra.mxu0 0
  %254 = vmatpush.bf16.msra.mxu0 0
  %255 = vmatpush.bf16.msra.mxu0 %v246
  %256 = vmatpush.bf16.msra.mxu0 %v245
  %257 = vmatpush.bf16.msra.mxu0 %v244
  %258 = vmatmul.bf16.gmra.mxu0 %v172
  %v259 = vpop.f32.mrf.mxu0
  %v260 = vadd.f32 0.0, %v259
  %v261 = vpop.f32.mrf.mxu0
  %262 = vdwg.mxu0
  %s263 = scalar_lea.vmem %s4, 72
  %v264 = vld [vmem:[%s263] sm:$0xf]
  %v265 = vld [vmem:[%s263 + $0x4] sm:$0xf]
  %v266 = vld [vmem:[%s263 + $0x8] sm:$0xf]
  %v267 = vld [vmem:[%s263 + $0xc] sm:$0xf]
  %v268 = vld [vmem:[%s263 + $0x10] sm:$0xf]
  %v269 = vld [vmem:[%s263 + $0x14] sm:$0xf]
  %v276 = vunpack.c.l.b16 %v264
  %v277 = vunpack.c.l.b16 %v265
  %v278 = vunpack.c.l.b16 %v266
  %v279 = vunpack.c.l.b16 %v267
  %v280 = vunpack.c.l.b16 %v268
  %v281 = vunpack.c.l.b16 %v269
  %v282 = vpack.c.b16 %v277, %v276
  %v283 = vpack.c.b16 %v279, %v278
  %v284 = vpack.c.b16 %v281, %v280
  %288 = vmatpush.bf16.msra.mxu0 0
  %289 = vmatpush.bf16.msra.mxu0 0
  %290 = vmatpush.bf16.msra.mxu0 0
  %291 = vmatpush.bf16.msra.mxu0 0
  %292 = vmatpush.bf16.msra.mxu0 0
  %293 = vmatpush.bf16.msra.mxu0 %v284
  %294 = vmatpush.bf16.msra.mxu0 %v283
  %295 = vmatpush.bf16.msra.mxu0 %v282
  %296 = vmatmul.bf16.gmra.mxu0 %v172
  %v297 = vpop.f32.mrf.mxu0
  %v298 = vadd.f32 0.0, %v297
  %v299 = vpop.f32.mrf.mxu0
  %300 = vdwg.mxu0
  %v302 = vrot.slane %v222, 2
  %v305 = vrot.slane %v260, 4
  %v308 = vrot.slane %v298, 6
  %vm310 = vcmask 1045504
  %v311 = vsel %vm310, %v184, %v302
  %vm312 = vcmask 1043456
  %v313 = vsel %vm312, %v302, %v305
  %vm314 = vcmask 1041408
  %v315 = vsel %vm314, %v305, %v308
  %v316 = vld [vmem:[%s5] sm:$0xff]
  %v317 = vld [vmem:[%s5 + $0x8] sm:$0xff]
  %v318 = vld [vmem:[%s5 + $0x10] sm:$0xff]
  %v319 = vadd.f32 %v311, %v316
  %v320 = vadd.f32 %v313, %v317
  %v321 = vadd.f32 %v315, %v318
  %v322 = vmul.f32 %v319, %v319
  %v323 = vmul.f32 %v320, %v320
  %v324 = vmul.f32 %v321, %v321
  %vm325 = vcmask 130048
  %v326 = vsel %vm325, %v322, 0.0
  %327 = vadd.xlane.f32.xlu0 %v326
  %v328 = vpop.xlane.xlu0 %327
  %v329 = vsel %vm325, %v323, 0.0
  %330 = vadd.xlane.f32.xlu0 %v329
  %v331 = vpop.xlane.xlu0 %330
  %v332 = vsel %vm325, %v324, 0.0
  %333 = vadd.xlane.f32.xlu0 %v332
  %v334 = vpop.xlane.xlu0 %333
  %v335 = vadd.f32 %v328, 1.0
  %v336 = vadd.f32 %v331, 1.0
  %v337 = vadd.f32 %v334, 1.0
  %v338 = vrcp.pop %v335
  %v339 = vmul.f32 %v335, %v338
  %v340 = vsub.f32 1.0, %v339
  %v341 = vmul.f32 %v338, %v340
  %v342 = vadd.f32 %v338, %v341
  %vm343 = vweird.f32 %v335
  %vm344 = vweird.f32 %v338
  %vm345 = vmor %vm343, %vm344
  %v346 = vsel %vm345, %v338, %v342
  %v347 = vand.u32 2147483647, %v335
  %vm348 = vcmp.eq.f32.partialorder %v347, 8.507059e+37
  %v349 = vand.u32 %v335, 2147483648
  %v350 = vor.u32 1.1754944e-38, %v349
  %v351 = vsel %vm348, %v350, %v346
  %v352 = vmul.f32 %v328, %v351
  %v353 = vrcp.pop %v336
  %v354 = vmul.f32 %v336, %v353
  %v355 = vsub.f32 1.0, %v354
  %v356 = vmul.f32 %v353, %v355
  %v357 = vadd.f32 %v353, %v356
  %vm358 = vweird.f32 %v336
  %vm359 = vweird.f32 %v353
  %vm360 = vmor %vm358, %vm359
  %v361 = vsel %vm360, %v353, %v357
  %v362 = vand.u32 2147483647, %v336
  %vm363 = vcmp.eq.f32.partialorder %v362, 8.507059e+37
  %v364 = vand.u32 %v336, 2147483648
  %v365 = vor.u32 1.1754944e-38, %v364
  %v366 = vsel %vm363, %v365, %v361
  %v367 = vmul.f32 %v331, %v366
  %v368 = vrcp.pop %v337
  %v369 = vmul.f32 %v337, %v368
  %v370 = vsub.f32 1.0, %v369
  %v371 = vmul.f32 %v368, %v370
  %v372 = vadd.f32 %v368, %v371
  %vm373 = vweird.f32 %v337
  %vm374 = vweird.f32 %v368
  %vm375 = vmor %vm373, %vm374
  %v376 = vsel %vm375, %v368, %v372
  %v377 = vand.u32 2147483647, %v337
  %vm378 = vcmp.eq.f32.partialorder %v377, 8.507059e+37
  %v379 = vand.u32 %v337, 2147483648
  %v380 = vor.u32 1.1754944e-38, %v379
  %v381 = vsel %vm378, %v380, %v376
  %v382 = vmul.f32 %v334, %v381
  %v383 = vmul.f32 %v352, %v319
  %v384 = vmul.f32 %v367, %v320
  %v385 = vmul.f32 %v382, %v321
  %v386 = vadd.f32 %v328, 1e-08
  %v387 = vadd.f32 %v331, 1e-08
  %v388 = vadd.f32 %v334, 1e-08
  %v389 = vrsqrt.pop %v386
  %v390 = vmul.f32 %v389, %v386
  %v391 = vmul.f32 %v390, %v389
  %v392 = vmul.f32 0.5, %v391
  %v393 = vsub.f32 1.5, %v392
  %v394 = vmul.f32 %v389, %v393
  %vm395 = vweird.f32 %v386
  %vm396 = vweird.f32 %v389
  %vm397 = vmor %vm395, %vm396
  %v398 = vsel %vm397, %v389, %v394
  %v399 = vrsqrt.pop %v387
  %v400 = vmul.f32 %v399, %v387
  %v401 = vmul.f32 %v400, %v399
  %v402 = vmul.f32 0.5, %v401
  %v403 = vsub.f32 1.5, %v402
  %v404 = vmul.f32 %v399, %v403
  %vm405 = vweird.f32 %v387
  %vm406 = vweird.f32 %v399
  %vm407 = vmor %vm405, %vm406
  %v408 = vsel %vm407, %v399, %v404
  %v409 = vrsqrt.pop %v388
  %v410 = vmul.f32 %v409, %v388
  %v411 = vmul.f32 %v410, %v409
  %v412 = vmul.f32 0.5, %v411
  %v413 = vsub.f32 1.5, %v412
  %v414 = vmul.f32 %v409, %v413
  %vm415 = vweird.f32 %v388
  %vm416 = vweird.f32 %v409
  %vm417 = vmor %vm415, %vm416
  %v418 = vsel %vm417, %v409, %v414
  %v419 = vmul.f32 %v383, %v398
  %v420 = vmul.f32 %v384, %v408
  %v421 = vmul.f32 %v385, %v418
  %v422 = vpack.c.bf16 %v420, %v419
  %v423 = vpack.c.bf16 %v421, %v421
  %v424 = vld [vmem:[%s7] sm:$0xf]
  %v425 = vld [vmem:[%s7 + $0x4] sm:$0xf]
  %v428 = vunpack.c.l.b16 %v424
  %v429 = vunpack.c.l.b16 %v425
  %v430 = vpack.c.b16 %v429, %v428
  %v433 = vsel %vm325, %v422, 0
  %v436 = vsel %vm325, %v423, 0
  %438 = vmatpush.bf16.msra.mxu0 0
  %439 = vmatpush.bf16.msra.mxu0 0
  %440 = vmatpush.bf16.msra.mxu0 0
  %441 = vmatpush.bf16.msra.mxu0 0
  %442 = vmatpush.bf16.msra.mxu0 0
  %443 = vmatpush.bf16.msra.mxu0 0
  %444 = vmatpush.bf16.msra.mxu0 0
  %445 = vmatpush.bf16.msra.mxu0 %v430
  %446 = vmatmul.bf16.gmra.mxu0 %v433
  %v447 = vpop.f32.mrf.mxu0
  %v448 = vadd.f32 0.0, %v447
  %v449 = vpop.f32.mrf.mxu0
  %v450 = vadd.f32 0.0, %v449
  %451 = vmatmul.bf16.gmra.mxu0 %v436
  %v452 = vpop.f32.mrf.mxu0
  %v453 = vadd.f32 0.0, %v452
  %v454 = vpop.f32.mrf.mxu0
  %455 = vdwg.mxu0
  %456 = vmatpush.bf16.xpose.msra.mxu0 0
  %457 = vmatpush.bf16.xpose.msra.mxu0 0
  %458 = vmatpush.bf16.xpose.msra.mxu0 0
  %459 = vmatpush.bf16.xpose.msra.mxu0 0
  %460 = vmatpush.bf16.xpose.msra.mxu0 0
  %461 = vmatpush.bf16.xpose.msra.mxu0 0
  %462 = vmatpush.bf16.xpose.msra.mxu0 %v436
  %463 = vmatpush.bf16.xpose.msra.mxu0 %v433
  %464 = vmatmul.bf16.gmra.mxu0 %v433
  %v465 = vpop.f32.mrf.mxu0
  %v466 = vadd.f32 0.0, %v465
  %v467 = vpop.f32.mrf.mxu0
  %v468 = vadd.f32 0.0, %v467
  %469 = vmatmul.bf16.gmra.mxu0 %v436
  %v470 = vpop.f32.mrf.mxu0
  %v471 = vadd.f32 0.0, %v470
  %v472 = vpop.f32.mrf.mxu0
  %473 = vdwg.mxu0
  %v474 = vmul.f32 %v466, 0.25
  %v475 = vmul.f32 %v468, 0.25
  %v476 = vmul.f32 %v471, 0.25
  %v477 = vld [vmem:[%s6] sm:$0xff]
  %v478 = vld [vmem:[%s6 + $0x8] sm:$0xff]
  %v479 = vld [vmem:[%s6 + $0x10] sm:$0xff]
  %v480 = vadd.f32 %v474, %v477
  %v481 = vadd.f32 %v475, %v478
  %v482 = vadd.f32 %v476, %v479
  %vm483 = vcmask 195584
  %v484 = vsel %vm483, %v480, -inf
  %485 = vmax.xlane.f32.xlu0 %v484
  %v486 = vpop.xlane.xlu0 %485
  %v487 = vsel %vm483, %v481, -inf
  %488 = vmax.xlane.f32.xlu0 %v487
  %v489 = vpop.xlane.xlu0 %488
  %v490 = vsel %vm483, %v482, -inf
  %491 = vmax.xlane.f32.xlu0 %v490
  %v492 = vpop.xlane.xlu0 %491
  %v493 = vsub.f32 %v480, %v486
  %v494 = vsub.f32 %v481, %v489
  %v495 = vsub.f32 %v482, %v492
  %v496 = vmul.f32 %v493, 1.442695
  %v497 = vpow.pop %v496
  %v498 = vmul.f32 %v494, 1.442695
  %v499 = vpow.pop %v498
  %v500 = vmul.f32 %v495, 1.442695
  %v501 = vpow.pop %v500
  %v502 = vsel %vm483, %v497, 0.0
  %503 = vadd.xlane.f32.xlu0 %v502
  %v504 = vpop.xlane.xlu0 %503
  %v505 = vsel %vm483, %v499, 0.0
  %506 = vadd.xlane.f32.xlu0 %v505
  %v507 = vpop.xlane.xlu0 %506
  %v508 = vsel %vm483, %v501, 0.0
  %509 = vadd.xlane.f32.xlu0 %v508
  %v510 = vpop.xlane.xlu0 %509
  %v511 = vrcp.pop %v504
  %v512 = vrcp.pop %v507
  %v513 = vrcp.pop %v510
  %v514 = vmul.f32 %v497, %v511
  %v515 = vmul.f32 %v499, %v512
  %v516 = vmul.f32 %v501, %v513
  %v517 = vpack.c.bf16 %v515, %v514
  %v518 = vpack.c.bf16 %v516, %v516
  %v519 = vpack.c.bf16 %v450, %v448
  %v520 = vpack.c.bf16 %v453, %v453
  %v522 = vsel %vm483, %v517, 0
  %v525 = vsel %vm483, %v518, 0
  %v528 = vsel %vm312, %v520, 0
  %530 = vmatpush.bf16.msra.mxu0 0
  %531 = vmatpush.bf16.msra.mxu0 0
  %532 = vmatpush.bf16.msra.mxu0 0
  %533 = vmatpush.bf16.msra.mxu0 0
  %534 = vmatpush.bf16.msra.mxu0 0
  %535 = vmatpush.bf16.msra.mxu0 0
  %536 = vmatpush.bf16.msra.mxu0 %v528
  %537 = vmatpush.bf16.msra.mxu0 %v519
  %538 = vmatmul.bf16.gmra.mxu0 %v522
  %v539 = vpop.f32.mrf.mxu0
  %v540 = vadd.f32 0.0, %v539
  %v541 = vpop.f32.mrf.mxu0
  %v542 = vadd.f32 0.0, %v541
  %543 = vmatmul.bf16.gmra.mxu0 %v525
  %v544 = vpop.f32.mrf.mxu0
  %v545 = vadd.f32 0.0, %v544
  %v546 = vpop.f32.mrf.mxu0
  %547 = vdwg.mxu0
  %v548 = vmax.f32 %v540, 0.0
  %v549 = vmax.f32 %v542, 0.0
  %v550 = vmax.f32 %v545, 0.0
  %v554 = vrot.slane %v548, 2
  %v555 = vrot.slane %v548, 4
  %v556 = vrot.slane %v548, 6
  %v557 = vrot.slane %v549, 2
  %v558 = vrot.slane %v549, 4
  %v559 = vrot.slane %v549, 6
  %v560 = vrot.slane %v550, 2
  %v561 = vrot.slane %v550, 4
  %v562 = vrot.slane %v550, 6
  %vm572 = vcmask 123904
  %v573 = vsel %vm572, %v548, -inf
  %v574 = vsel %vm572, %v556, -inf
  %v575 = vsel %vm572, %v558, -inf
  %v576 = vmax.f32 %v573, %v575
  %v577 = vsel %vm572, %v560, -inf
  %v578 = vmax.f32 %v574, %v577
  %v579 = vmax.f32 %v576, %v578
  %v580 = vsel %vm572, %v554, -inf
  %v581 = vsel %vm572, %v549, -inf
  %v582 = vsel %vm572, %v559, -inf
  %v583 = vmax.f32 %v580, %v582
  %v584 = vsel %vm572, %v561, -inf
  %v585 = vmax.f32 %v581, %v584
  %v586 = vmax.f32 %v583, %v585
  %v587 = vsel %vm572, %v555, -inf
  %v588 = vsel %vm572, %v557, -inf
  %v589 = vsel %vm572, %v550, -inf
  %v590 = vmax.f32 %v587, %v589
  %v591 = vsel %vm572, %v562, -inf
  %v592 = vmax.f32 %v588, %v591
  %v593 = vmax.f32 %v590, %v592
  %v597 = vrot.slane %v579, 1
  %v598 = vrot.slane %v579, 2
  %v599 = vrot.slane %v579, 3
  %v600 = vrot.slane %v586, 1
  %v601 = vrot.slane %v586, 2
  %v602 = vrot.slane %v586, 3
  %v603 = vrot.slane %v593, 1
  %v604 = vrot.slane %v593, 2
  %v605 = vrot.slane %v593, 3
  %v606 = vsel %vm67, %v579, %v597
  %vm607 = vcmask 1042434
  %v608 = vsel %vm607, %v598, %v599
  %v609 = vsel %vm314, %v606, %v608
  %vm610 = vcmask 1041409
  %v611 = vsel %vm610, %v579, %v597
  %vm612 = vcmask 1043459
  %v613 = vsel %vm612, %v598, %v599
  %vm614 = vcmask 1042433
  %v615 = vsel %vm614, %v611, %v613
  %v616 = vrot.slane %v615, 1
  %v617 = vsel %vm67, %v586, %v600
  %v618 = vsel %vm607, %v601, %v602
  %v619 = vsel %vm314, %v617, %v618
  %v620 = vsel %vm610, %v586, %v600
  %v621 = vsel %vm612, %v601, %v602
  %v622 = vsel %vm614, %v620, %v621
  %v623 = vrot.slane %v622, 1
  %v624 = vsel %vm67, %v593, %v603
  %v625 = vsel %vm607, %v604, %v605
  %v626 = vsel %vm314, %v624, %v625
  %v627 = vsel %vm610, %v593, %v603
  %v628 = vsel %vm612, %v604, %v605
  %v629 = vsel %vm614, %v627, %v628
  %v630 = vrot.slane %v629, 1
  %631 = vst [vmem:[#allocation1] ss:$4 sm:$0xff] %v548
  %s632 = scalar_lea.vmem [#allocation1], 1
  %633 = vst [vmem:[%s632] ss:$4 sm:$0xff] %v554
  %s634 = scalar_lea.vmem [#allocation1], 2
  %635 = vst [vmem:[%s634] ss:$4 sm:$0xff] %v555
  %v636 = vld.sshfl [vmem:[#allocation1] sm:$0xff pattern:$0x73625140]
  %s637 = scalar_lea.vmem [#allocation1], 32
  %638 = vst [vmem:[%s637] ss:$4 sm:$0xff] %v556
  %s639 = scalar_lea.vmem [#allocation1], 33
  %640 = vst [vmem:[%s639] ss:$4 sm:$0xff] %v549
  %s641 = scalar_lea.vmem [#allocation1], 34
  %642 = vst [vmem:[%s641] ss:$4 sm:$0xff] %v557
  %v643 = vld.sshfl [vmem:[#allocation1 + $0x20] sm:$0xff pattern:$0x73625140]
  %644 = vst [vmem:[#allocation1] ss:$4 sm:$0xff] %v558
  %645 = vst [vmem:[%s632] ss:$4 sm:$0xff] %v559
  %646 = vst [vmem:[%s634] ss:$4 sm:$0xff] %v550
  %v647 = vld.sshfl [vmem:[#allocation1] sm:$0xff pattern:$0x73625140]
  %648 = vst [vmem:[%s637] ss:$4 sm:$0xff] %v560
  %649 = vst [vmem:[%s639] ss:$4 sm:$0xff] %v561
  %650 = vst [vmem:[%s641] ss:$4 sm:$0xff] %v562
  %v651 = vld.sshfl [vmem:[#allocation1 + $0x20] sm:$0xff pattern:$0x73625140]
  %vm656 = vcmask 128000
  %v657 = vsel %vm656, %v636, 0.0
  %v658 = vsel %vm656, %v643, 0.0
  %v659 = vadd.f32 %v657, %v658
  %v660 = vsel %vm656, %v647, 0.0
  %v661 = vadd.f32 %v659, %v660
  %v662 = vsel %vm656, %v651, 0.0
  %v663 = vadd.f32 %v661, %v662
  %v664 = vmul.f32 %v663, 0.25
  %v666 = vrot.slane %v664, 1
  %v667 = vrot.slane %v664, 2
  %v668 = vrot.slane %v664, 3
  %v669 = vrot.slane %v664, 4
  %v670 = vrot.slane %v664, 5
  %671 = vst [vmem:[#allocation1] ss:$9 sm:$0xff] %v609
  %s672 = scalar_lea.vmem [#allocation1], 1
  %673 = vst [vmem:[%s672] ss:$9 sm:$0xff] %v623
  %v674 = vld [vmem:[#allocation1] sm:$0xff]
  %676 = vst [vmem:[#allocation1] ss:$9 sm:$0xff] %v664
  %s677 = scalar_lea.vmem [#allocation1], 1
  %678 = vst [vmem:[%s677] ss:$9 sm:$0xff] %v668
  %v679 = vld [vmem:[#allocation1] sm:$0xff]
  %680 = vrot.lane.b32.xlu0 %v679, 16
  %v681 = vpop.permute.xlu0 %680
  %683 = vst [vmem:[#allocation1] ss:$9 sm:$0xff] %v616
  %s684 = scalar_lea.vmem [#allocation1], 1
  %685 = vst [vmem:[%s684] ss:$9 sm:$0xff] %v626
  %v686 = vld [vmem:[#allocation1] sm:$0xff]
  %687 = vrot.lane.b32.xlu0 %v686, 32
  %v688 = vpop.permute.xlu0 %687
  %690 = vst [vmem:[#allocation1] ss:$9 sm:$0xff] %v666
  %s691 = scalar_lea.vmem [#allocation1], 1
  %692 = vst [vmem:[%s691] ss:$9 sm:$0xff] %v669
  %v693 = vld [vmem:[#allocation1] sm:$0xff]
  %694 = vrot.lane.b32.xlu0 %v693, 48
  %v695 = vpop.permute.xlu0 %694
  %697 = vst [vmem:[#allocation1] ss:$9 sm:$0xff] %v619
  %s698 = scalar_lea.vmem [#allocation1], 1
  %699 = vst [vmem:[%s698] ss:$9 sm:$0xff] %v630
  %v700 = vld [vmem:[#allocation1] sm:$0xff]
  %701 = vrot.lane.b32.xlu0 %v700, 64
  %v702 = vpop.permute.xlu0 %701
  %704 = vst [vmem:[#allocation1] ss:$9 sm:$0xff] %v667
  %s705 = scalar_lea.vmem [#allocation1], 1
  %706 = vst [vmem:[%s705] ss:$9 sm:$0xff] %v670
  %v707 = vld [vmem:[#allocation1] sm:$0xff]
  %708 = vrot.lane.b32.xlu0 %v707, 80
  %v709 = vpop.permute.xlu0 %708
  %v711 = vsel %vm325, %v674, %v681
  %vm712 = vcmask 261120
  %v713 = vsel %vm712, %v711, %v688
  %v714 = vsel %vm170, %v713, %v695
  %vm715 = vcmask 523264
  %v716 = vsel %vm715, %v714, %v702
  %vm717 = vcmask 654336
  %v718 = vsel %vm717, %v716, %v709
  %v719 = vpack.c.bf16 %v718, %v718
  %v720 = vld [vmem:[%s8] sm:$0xf]
  %v721 = vld [vmem:[%s8 + $0x4] sm:$0xf]
  %v722 = vld [vmem:[%s8 + $0x8] sm:$0xf]
  %v723 = vld [vmem:[%s8 + $0xc] sm:$0xf]
  %v724 = vld [vmem:[%s8 + $0x10] sm:$0xf]
  %v725 = vld [vmem:[%s8 + $0x14] sm:$0xf]
  %v726 = vld [vmem:[%s8 + $0x18] sm:$0xf]
  %v727 = vld [vmem:[%s8 + $0x1c] sm:$0xf]
  %v728 = vld [vmem:[%s8 + $0x20] sm:$0xf]
  %v729 = vld [vmem:[%s8 + $0x24] sm:$0xf]
  %v730 = vld [vmem:[%s8 + $0x28] sm:$0xf]
  %v731 = vld [vmem:[%s8 + $0x2c] sm:$0xf]
  %v732 = vld [vmem:[%s9] sm:$0x1]
  %v734 = vperm.slane %v732, 0
  %v748 = vunpack.c.l.b16 %v720
  %v749 = vunpack.c.l.b16 %v721
  %v750 = vunpack.c.l.b16 %v722
  %v751 = vunpack.c.l.b16 %v723
  %v752 = vunpack.c.l.b16 %v724
  %v753 = vunpack.c.l.b16 %v725
  %v754 = vunpack.c.l.b16 %v726
  %v755 = vunpack.c.l.b16 %v727
  %v756 = vunpack.c.l.b16 %v728
  %v757 = vunpack.c.l.b16 %v729
  %v758 = vunpack.c.l.b16 %v730
  %v759 = vunpack.c.l.b16 %v731
  %v760 = vpack.c.b16 %v749, %v748
  %v761 = vpack.c.b16 %v751, %v750
  %v762 = vpack.c.b16 %v753, %v752
  %v763 = vpack.c.b16 %v755, %v754
  %v764 = vpack.c.b16 %v757, %v756
  %v765 = vpack.c.b16 %v759, %v758
  %vm772 = vcmask 785408
  %v774 = vsel %vm772, %v719, 0
  %776 = vmatpush.bf16.msra.mxu0 0
  %777 = vmatpush.bf16.msra.mxu0 0
  %778 = vmatpush.bf16.msra.mxu0 %v765
  %779 = vmatpush.bf16.msra.mxu0 %v764
  %780 = vmatpush.bf16.msra.mxu0 %v763
  %781 = vmatpush.bf16.msra.mxu0 %v762
  %782 = vmatpush.bf16.msra.mxu0 %v761
  %783 = vmatpush.bf16.msra.mxu0 %v760
  %784 = vmatmul.bf16.gmra.mxu0 %v774
  %v785 = vpop.f32.mrf.mxu0
  %v786 = vadd.f32 %v734, %v785
  %v787 = vpop.f32.mrf.mxu0
  %788 = vdwg.mxu0
  %v789 = vtanh.pop %v786
  %v790 = vpack.c.bf16 %v789, %v789
  %v791 = vld [vmem:[%s10] sm:$0xf]
  %v792 = vld [vmem:[%s10 + $0x4] sm:$0xf]
  %v793 = vld [vmem:[%s10 + $0x8] sm:$0xf]
  %v794 = vld [vmem:[%s10 + $0xc] sm:$0xf]
  %v795 = vld [vmem:[#allocation2] sm:$0x1]
  %v797 = vperm.slane %v795, 0
  %v803 = vunpack.c.l.b16 %v791
  %v804 = vunpack.c.l.b16 %v792
  %v805 = vunpack.c.l.b16 %v793
  %v806 = vunpack.c.l.b16 %v794
  %v807 = vpack.c.b16 %v804, %v803
  %v808 = vpack.c.b16 %v806, %v805
  %v812 = vsel %vm712, %v790, 0
  %814 = vmatpush.bf16.msra.mxu0 0
  %815 = vmatpush.bf16.msra.mxu0 0
  %816 = vmatpush.bf16.msra.mxu0 0
  %817 = vmatpush.bf16.msra.mxu0 0
  %818 = vmatpush.bf16.msra.mxu0 0
  %819 = vmatpush.bf16.msra.mxu0 0
  %820 = vmatpush.bf16.msra.mxu0 %v808
  %821 = vmatpush.bf16.msra.mxu0 %v807
  %822 = vmatmul.bf16.gmra.mxu0 %v812
  %v823 = vpop.f32.mrf.mxu0
  %v824 = vadd.f32 %v797, %v823
  %v825 = vpop.f32.mrf.mxu0
  %826 = vdwg.mxu0
  %v827 = vmul.f32 %v824, 10.0
  %vm828 = vcmask 1024
  %829 = vst.msk [vmem:[%s12] sm:$0x3] %vm828, %v827
  // Predicated region
  $region50: #{gcn_caps_forward.1} parent=0 // pred_check
    _
  $region51: #{gcn_caps_forward.1} parent=0 // pred_check_branch
    %831 = sbr.rel (0) target = $region53
  $region52: #{gcn_caps_forward.1} parent=0 // pred_region
    _
  $region53: #{gcn_caps_forward.1} parent=0 // pred_fallthru
    _
  // Predicated region
  $region54: #{gcn_caps_forward.1} parent=0 // pred_check
    _
  $region55: #{gcn_caps_forward.1} parent=0 // pred_check_branch
    %833 = sbr.rel (0) target = $region57
  $region56: #{gcn_caps_forward.1} parent=0 // pred_region
    _
  $region57: #{gcn_caps_forward.1} parent=0 // pred_fallthru
    _

</llo_original>
